<compile_context>
chip_gen: v7x
topology: tpu7x:2x2x1
jax: 0.10.0
libtpu: 0.0.40
codegen_flags: <defaults>
</compile_context>

<pallas_src>
import functools
import math

import jax
import jax.numpy as jnp
from jax.experimental import pallas as pl
from jax.experimental.pallas import tpu as pltpu


def _round_up(v, m):
    return ((v + m - 1) // m) * m


def _apply_dropout(x, keep_mask, dropout_p):
    """F.dropout(training=True) semantics: keep w.p. 1-p, scale kept by 1/(1-p)."""
    x32 = x.astype(jnp.float32)
    if keep_mask is None or dropout_p <= 0.0:
        return x32
    inv_keep = jnp.float32(1.0 / (1.0 - dropout_p))
    return jnp.where(keep_mask, x32 * inv_keep, jnp.float32(0.0))


def hgnn_matmul_residual_kernel(x_ref, g_ref, o_ref):
    """o[i,j] (f32, VMEM-resident over k) += G[i,k] @ x_drop[k,j]; += x_drop at k==i."""
    i = pl.program_id(0)      # output row tile
    k = pl.program_id(2)      # reduction tile over N (innermost -> "arbitrary")

    @pl.when(k == 0)
    def _():
        o_ref[...] = jnp.zeros_like(o_ref)

    # bf16 operands straight from HBM, f32 accumulation on the MXU.
    o_ref[...] += jnp.dot(g_ref[...], x_ref[...],
                          preferred_element_type=jnp.float32)

    # Residual: this k-block of x_drop rows IS the output i-block exactly when k == i.
    @pl.when(k == i)
    def _():
        o_ref[...] += x_ref[...].astype(jnp.float32)


def hgnn_embedding_forward(x, G, keep_mask=None, *, dropout_p=0.1,
                           tile_n=1024, tile_f=None):
    """x: [N, F] node features, G: [N, N] propagation matrix -> [N, F] (f32)."""
    N, F = x.shape
    assert G.shape == (N, N)
    assert 0.0 <= dropout_p < 1.0

    # ---- tile selection -----------------------------------------------------
    tile_n = min(tile_n, _round_up(N, 128))
    f_padded = _round_up(F, 128)
    if tile_f is None:
        # Collapse the j axis whenever the (padded) feature dim is small enough:
        # G (the N x N operand, dominant HBM stream) is then fetched exactly once.
        tile_f = f_padded if f_padded <= 2048 else 1024
    tile_f = min(tile_f, f_padded)

    Np = _round_up(N, tile_n)
    Fp = _round_up(F, tile_f)
    grid = (Np // tile_n, Fp // tile_f, Np // tile_n)

    # ---- memory-bound prologue (hoisted out of the MXU kernel) ---------------
    # Dropout + zero-pad + bf16 cast fuse into one pass under jit.  Zero padding
    # along N is required so padded reduction blocks contribute exactly zero.
    x_drop = _apply_dropout(x, keep_mask, dropout_p)
    x_p = jnp.pad(x_drop, ((0, Np - N), (0, Fp - F))).astype(jnp.bfloat16)
    # NOTE: G is constant per graph; callers that reuse it across steps should
    # hoist/cache this pad+cast (or jit the whole step so it is done once).
    g_p = jnp.pad(G.astype(jnp.float32), ((0, Np - N), (0, Np - N))).astype(jnp.bfloat16)

    # ---- VMEM budget: double-buffered bf16 inputs + f32 output block ---------
    vmem_limit = int(min(
        max(2 * 2 * tile_n * (tile_f + tile_n)        # bf16 x & G tiles, x2 buffers
            + 2 * 4 * tile_n * tile_f                 # f32 output block (budget 2)
            + (8 << 20),                              # headroom
            32 << 20),
        100 << 20))

    out = pl.pallas_call(
        hgnn_matmul_residual_kernel,
        out_shape=jax.ShapeDtypeStruct((Np, Fp), jnp.float32),
        grid=grid,
        in_specs=[
            pl.BlockSpec((tile_n, tile_f), lambda i, j, k: (k, j)),   # x_drop (RHS, bf16)
            pl.BlockSpec((tile_n, tile_n), lambda i, j, k: (i, k)),   # G      (LHS, bf16)
        ],
        out_specs=pl.BlockSpec((tile_n, tile_f), lambda i, j, k: (i, j)),
        compiler_params=pltpu.CompilerParams(
            dimension_semantics=("parallel", "parallel", "arbitrary"),
            vmem_limit_bytes=vmem_limit),
        cost_estimate=pl.CostEstimate(
            flops=2 * Np * Np * Fp,
            transcendentals=0,
            bytes_accessed=(2 * Np * Np * (Fp // tile_f)      # G re-streamed per j tile
                            + 2 * Np * Fp * (Np // tile_n)    # x re-streamed per i tile
                            + 4 * Np * Fp)),                  # f32 output
    )(x_p, g_p)

    return out[:N, :F]


def hgnn_embedding_reference(x, G, keep_mask, *, dropout_p):
    """Pure-JAX reference with the same dropout mask and bf16 operand rounding."""
    x_drop = _apply_dropout(x, keep_mask, dropout_p)
    x_bf = x_drop.astype(jnp.bfloat16)
    g_bf = G.astype(jnp.bfloat16)
    return (jnp.dot(g_bf, x_bf, preferred_element_type=jnp.float32)
            + x_bf.astype(jnp.float32))


def init_hgnn_embedding_params(key, in_ch, n_hid):
    """hgc1.weight / hgc1.bias exist in the PyTorch module but are unused by forward."""
    stdv = 1.0 / math.sqrt(n_hid)
    kw, kb = jax.random.split(key)
    return {
        "hgc1.weight": jax.random.uniform(kw, (in_ch, n_hid), jnp.float32, -stdv, stdv),
        "hgc1.bias": jax.random.uniform(kb, (n_hid,), jnp.float32, -stdv, stdv),
    }


if __name__ == "__main__":
    key = jax.random.PRNGKey(0)
    k_x, k_g, k_drop, k_p = jax.random.split(key, 4)

    N = 256        # number of nodes
    in_ch = 128    # feature dim
    dropout_p = 0.1

    x = jax.random.normal(k_x, (N, in_ch), dtype=jnp.float32)
    G = jax.random.normal(k_g, (N, N), dtype=jnp.float32) * (1.0 / N)

    # Parameters exist in the PyTorch module but its forward never uses them.
    _params = init_hgnn_embedding_params(k_p, in_ch, in_ch)

    # Dropout keep-mask (training mode, as F.dropout's default implies).  Computed
    # once in the wrapper and shared with the reference.
    # TODO(synk): mask is generated with jax.random, not bit-identical to torch's RNG stream.
    keep = jax.random.bernoulli(k_drop, 1.0 - dropout_p, x.shape)

    fwd = jax.jit(functools.partial(hgnn_embedding_forward, dropout_p=dropout_p))
    out = jax.block_until_ready(fwd(x, G, keep))
    assert out.shape == (N, in_ch) and out.dtype == jnp.float32

    ref = jax.block_until_ready(
        hgnn_embedding_reference(x, G, keep, dropout_p=dropout_p))
    assert bool(jnp.allclose(out, ref, atol=1e-2, rtol=1e-2)), "kernel vs reference mismatch"

    print("KERNEL_OK")
</pallas_src>

<mosaic_0001>
module attributes {stable_mosaic.version = 11 : i64} {
  func.func @hgnn_matmul_residual_kernel(%arg0: i32, %arg1: i32, %arg2: i32, %arg3: memref<256x128xbf16, #tpu.memory_space<vmem>>, %arg4: memref<256x256xbf16, #tpu.memory_space<vmem>>, %arg5: memref<256x128xf32, #tpu.memory_space<vmem>>) attributes {dimension_semantics = [#tpu.dimension_semantics<parallel>, #tpu.dimension_semantics<parallel>, #tpu.dimension_semantics<arbitrary>], iteration_bounds = array<i64: 1, 1, 1>, scalar_prefetch = 0 : i64, scratch_operands = 0 : i64, tpu.core_type = #tpu.core_type<tc>, window_params = [{transform_indices = @transform_0, window_bounds = array<i64: 256, 128>}, {transform_indices = @transform_1, window_bounds = array<i64: 256, 256>}, {transform_indices = @transform_2, window_bounds = array<i64: 256, 128>}]} {
    %c0_i32 = arith.constant 0 : i32
    %0 = arith.cmpi eq, %arg2, %c0_i32 : i32
    %1 = arith.extui %0 : i1 to i32
    %c0_i32_0 = arith.constant 0 : i32
    %2 = arith.cmpi ne, %1, %c0_i32_0 : i32
    scf.if %2 {
      %cst_9 = arith.constant 0.000000e+00 : f32
      %12 = vector.broadcast %cst_9 : f32 to vector<256x128xf32>
      %c0_10 = arith.constant 0 : index
      %c0_11 = arith.constant 0 : index
      %13 = vector.load %arg5[%c0_10, %c0_11] : memref<256x128xf32, #tpu.memory_space<vmem>>, vector<256x128xf32>
      tpu.vector_store %arg5[%c0_10, %c0_11], %12 {strides = array<i32>} : memref<256x128xf32, #tpu.memory_space<vmem>>, vector<256x128xf32>,
    } else {
    }
    %c0 = arith.constant 0 : index
    %c0_1 = arith.constant 0 : index
    %3 = vector.load %arg5[%c0, %c0_1] : memref<256x128xf32, #tpu.memory_space<vmem>>, vector<256x128xf32>
    %c0_2 = arith.constant 0 : index
    %c0_3 = arith.constant 0 : index
    %4 = vector.load %arg4[%c0_2, %c0_3] : memref<256x256xbf16, #tpu.memory_space<vmem>>, vector<256x256xbf16>
    %c0_4 = arith.constant 0 : index
    %c0_5 = arith.constant 0 : index
    %5 = vector.load %arg3[%c0_4, %c0_5] : memref<256x128xbf16, #tpu.memory_space<vmem>>, vector<256x128xbf16>
    %cst = arith.constant dense<0.000000e+00> : vector<256x128xf32>
    %6 = tpu.matmul %4, %5, %cst {dimension_numbers = #tpu.dot_dimension_numbers<[1], [0], [0], [1], [0, 0, 1, 1], [], []>} : vector<256x256xbf16>, vector<256x128xbf16>, vector<256x128xf32> -> vector<256x128xf32>
    %7 = arith.addf %3, %6 : vector<256x128xf32>
    %c0_6 = arith.constant 0 : index
    %c0_7 = arith.constant 0 : index
    %8 = vector.load %arg5[%c0_6, %c0_7] : memref<256x128xf32, #tpu.memory_space<vmem>>, vector<256x128xf32>
    tpu.vector_store %arg5[%c0_6, %c0_7], %7 {strides = array<i32>} : memref<256x128xf32, #tpu.memory_space<vmem>>, vector<256x128xf32>,
    %9 = arith.cmpi eq, %arg2, %arg0 : i32
    %10 = arith.extui %9 : i1 to i32
    %c0_i32_8 = arith.constant 0 : i32
    %11 = arith.cmpi ne, %10, %c0_i32_8 : i32
    scf.if %11 {
      %c0_9 = arith.constant 0 : index
      %c0_10 = arith.constant 0 : index
      %12 = vector.load %arg5[%c0_9, %c0_10] : memref<256x128xf32, #tpu.memory_space<vmem>>, vector<256x128xf32>
      %c0_11 = arith.constant 0 : index
      %c0_12 = arith.constant 0 : index
      %13 = vector.load %arg3[%c0_11, %c0_12] : memref<256x128xbf16, #tpu.memory_space<vmem>>, vector<256x128xbf16>
      %14 = arith.extf %13 : vector<256x128xbf16> to vector<256x128xf32>
      %15 = arith.addf %12, %14 : vector<256x128xf32>
      %c0_13 = arith.constant 0 : index
      %c0_14 = arith.constant 0 : index
      %16 = vector.load %arg5[%c0_13, %c0_14] : memref<256x128xf32, #tpu.memory_space<vmem>>, vector<256x128xf32>
      tpu.vector_store %arg5[%c0_13, %c0_14], %15 {strides = array<i32>} : memref<256x128xf32, #tpu.memory_space<vmem>>, vector<256x128xf32>,
    } else {
    }
    return
  }
  func.func @transform_0(%arg0: i32, %arg1: i32, %arg2: i32) -> (i32, i32) {
    %c0_i32 = arith.constant 0 : i32
    return %arg2, %arg1 : i32, i32
  }
  func.func @transform_1(%arg0: i32, %arg1: i32, %arg2: i32) -> (i32, i32) {
    %c0_i32 = arith.constant 0 : i32
    return %arg0, %arg2 : i32, i32
  }
  func.func @transform_2(%arg0: i32, %arg1: i32, %arg2: i32) -> (i32, i32) {
    %c0_i32 = arith.constant 0 : i32
    return %arg0, %arg1 : i32, i32
  }
}

</mosaic_0001>

<llo_original>
// kernel: hgnn_embedding_forward.1
$region0: #{hgnn_embedding_forward.1}
  #allocation0 [shape = 'u32[]', space=smem, size = 0x4, offset = 0x4, fixed_abs, tag = 'smem constant byte address 0x4 - core index']
  #allocation1 [shape = 'u32[144,128]{1,0:T(1,128)}', space=vmem, size = 0x12000, scoped, tag = 'internal scratch']
  %s0 = inlined_call_operand.vmem [shape: bf16[256,128], index: 0, kind: input, shape index: {}]
  %s1 = inlined_call_operand.vmem [shape: bf16[256,256], index: 1, kind: input, shape index: {}]
  %s2 = inlined_call_operand.hbm [shape: f32[256,128], index: 2, kind: output, shape index: {}]
  %s3 = sld [smem:[#allocation0]]
  $region26: #{hgnn_embedding_forward.1} parent=0
    _
  %s5 = ssub.s32 1, %s3
  %s6 = scalar_select 0, %s5, %s3
  $region1: #{hgnn_embedding_forward.1} parent=0
    #allocation2 [shape = 'u8[131072]{0}', space=vmem, size = 0x20000, scoped, tag = 'output window, operand 0, single buffered']
    #allocation3 [shape = 's32[1]{0}', space=sflag, size = 0x4, scoped, tag = 'scoped memory for hgnn_embedding_forward.1']
    %7 = vsyncpa [#allocation3], 0
    // Predicated region
    $region2: #{hgnn_embedding_forward.1} parent=1 // pred_check
      _
    $region3: #{hgnn_embedding_forward.1} parent=1 // pred_check_branch
      %9 = sbr.rel (0) target = $region5
    $region4: #{hgnn_embedding_forward.1} parent=1 // pred_region
      _
    $region5: #{hgnn_embedding_forward.1} parent=1 // pred_fallthru
      _
    // Predicated region
    $region6: #{hgnn_embedding_forward.1} parent=1 // pred_check
      _
    $region7: #{hgnn_embedding_forward.1} parent=1 // pred_check_branch
      %11 = sbr.rel (0) target = $region9
    $region8: #{hgnn_embedding_forward.1} parent=1 // pred_region
      _
    $region9: #{hgnn_embedding_forward.1} parent=1 // pred_fallthru
      _
    %p13 = scmp.eq.s32.totalorder 0, 0
    // Predicated region
    $region10: #{hgnn_embedding_forward.1} parent=1 // pred_check
      %p14 = pneg %p13
    $region11: #{hgnn_embedding_forward.1} parent=1 // pred_check_branch
      %16 = sbr.rel (%p14) target = $region13
    $region12: #{hgnn_embedding_forward.1} parent=1 // pred_region
      %17 = vst [vmem:[#allocation2] sm:$0xff] 0.0
      %18 = vst [vmem:[#allocation2 + $0x8] sm:$0xff] 0.0
      %19 = vst [vmem:[#allocation2 + $0x10] sm:$0xff] 0.0
      %20 = vst [vmem:[#allocation2 + $0x18] sm:$0xff] 0.0
      %21 = vst [vmem:[#allocation2 + $0x20] sm:$0xff] 0.0
      %22 = vst [vmem:[#allocation2 + $0x28] sm:$0xff] 0.0
      %23 = vst [vmem:[#allocation2 + $0x30] sm:$0xff] 0.0
      %24 = vst [vmem:[#allocation2 + $0x38] sm:$0xff] 0.0
      %25 = vst [vmem:[#allocation2 + $0x40] sm:$0xff] 0.0
      %26 = vst [vmem:[#allocation2 + $0x48] sm:$0xff] 0.0
      %27 = vst [vmem:[#allocation2 + $0x50] sm:$0xff] 0.0
      %28 = vst [vmem:[#allocation2 + $0x58] sm:$0xff] 0.0
      %29 = vst [vmem:[#allocation2 + $0x60] sm:$0xff] 0.0
      %30 = vst [vmem:[#allocation2 + $0x68] sm:$0xff] 0.0
      %31 = vst [vmem:[#allocation2 + $0x70] sm:$0xff] 0.0
      %32 = vst [vmem:[#allocation2 + $0x78] sm:$0xff] 0.0
      %33 = vst [vmem:[#allocation2 + $0x80] sm:$0xff] 0.0
      %34 = vst [vmem:[#allocation2 + $0x88] sm:$0xff] 0.0
      %35 = vst [vmem:[#allocation2 + $0x90] sm:$0xff] 0.0
      %36 = vst [vmem:[#allocation2 + $0x98] sm:$0xff] 0.0
      %37 = vst [vmem:[#allocation2 + $0xa0] sm:$0xff] 0.0
      %38 = vst [vmem:[#allocation2 + $0xa8] sm:$0xff] 0.0
      %39 = vst [vmem:[#allocation2 + $0xb0] sm:$0xff] 0.0
      %40 = vst [vmem:[#allocation2 + $0xb8] sm:$0xff] 0.0
      %41 = vst [vmem:[#allocation2 + $0xc0] sm:$0xff] 0.0
      %42 = vst [vmem:[#allocation2 + $0xc8] sm:$0xff] 0.0
      %43 = vst [vmem:[#allocation2 + $0xd0] sm:$0xff] 0.0
      %44 = vst [vmem:[#allocation2 + $0xd8] sm:$0xff] 0.0
      %45 = vst [vmem:[#allocation2 + $0xe0] sm:$0xff] 0.0
      %46 = vst [vmem:[#allocation2 + $0xe8] sm:$0xff] 0.0
      %47 = vst [vmem:[#allocation2 + $0xf0] sm:$0xff] 0.0
      %48 = vst [vmem:[#allocation2 + $0xf8] sm:$0xff] 0.0
    $region13: #{hgnn_embedding_forward.1} parent=1 // pred_fallthru
      _
    %v49 = vld [vmem:[#allocation2] sm:$0xff]
    %v50 = vld [vmem:[#allocation2 + $0x8] sm:$0xff]
    %v51 = vld [vmem:[#allocation2 + $0x10] sm:$0xff]
    %v52 = vld [vmem:[#allocation2 + $0x18] sm:$0xff]
    %v53 = vld [vmem:[#allocation2 + $0x20] sm:$0xff]
    %v54 = vld [vmem:[#allocation2 + $0x28] sm:$0xff]
    %v55 = vld [vmem:[#allocation2 + $0x30] sm:$0xff]
    %v56 = vld [vmem:[#allocation2 + $0x38] sm:$0xff]
    %v57 = vld [vmem:[#allocation2 + $0x40] sm:$0xff]
    %v58 = vld [vmem:[#allocation2 + $0x48] sm:$0xff]
    %v59 = vld [vmem:[#allocation2 + $0x50] sm:$0xff]
    %v60 = vld [vmem:[#allocation2 + $0x58] sm:$0xff]
    %v61 = vld [vmem:[#allocation2 + $0x60] sm:$0xff]
    %v62 = vld [vmem:[#allocation2 + $0x68] sm:$0xff]
    %v63 = vld [vmem:[#allocation2 + $0x70] sm:$0xff]
    %v64 = vld [vmem:[#allocation2 + $0x78] sm:$0xff]
    %v65 = vld [vmem:[#allocation2 + $0x80] sm:$0xff]
    %v66 = vld [vmem:[#allocation2 + $0x88] sm:$0xff]
    %v67 = vld [vmem:[#allocation2 + $0x90] sm:$0xff]
    %v68 = vld [vmem:[#allocation2 + $0x98] sm:$0xff]
    %v69 = vld [vmem:[#allocation2 + $0xa0] sm:$0xff]
    %v70 = vld [vmem:[#allocation2 + $0xa8] sm:$0xff]
    %v71 = vld [vmem:[#allocation2 + $0xb0] sm:$0xff]
    %v72 = vld [vmem:[#allocation2 + $0xb8] sm:$0xff]
    %v73 = vld [vmem:[#allocation2 + $0xc0] sm:$0xff]
    %v74 = vld [vmem:[#allocation2 + $0xc8] sm:$0xff]
    %v75 = vld [vmem:[#allocation2 + $0xd0] sm:$0xff]
    %v76 = vld [vmem:[#allocation2 + $0xd8] sm:$0xff]
    %v77 = vld [vmem:[#allocation2 + $0xe0] sm:$0xff]
    %v78 = vld [vmem:[#allocation2 + $0xe8] sm:$0xff]
    %v79 = vld [vmem:[#allocation2 + $0xf0] sm:$0xff]
    %v80 = vld [vmem:[#allocation2 + $0xf8] sm:$0xff]
    %v81 = vld [vmem:[%s1] sm:$0xff]
    %v82 = vld [vmem:[%s1 + $0x8] sm:$0xff]
    %v83 = vld [vmem:[%s1 + $0x10] sm:$0xff]
    %v84 = vld [vmem:[%s1 + $0x18] sm:$0xff]
    %v85 = vld [vmem:[%s1 + $0x20] sm:$0xff]
    %v86 = vld [vmem:[%s1 + $0x28] sm:$0xff]
    %v87 = vld [vmem:[%s1 + $0x30] sm:$0xff]
    %v88 = vld [vmem:[%s1 + $0x38] sm:$0xff]
    %v89 = vld [vmem:[%s1 + $0x40] sm:$0xff]
    %v90 = vld [vmem:[%s1 + $0x48] sm:$0xff]
    %v91 = vld [vmem:[%s1 + $0x50] sm:$0xff]
    %v92 = vld [vmem:[%s1 + $0x58] sm:$0xff]
    %v93 = vld [vmem:[%s1 + $0x60] sm:$0xff]
    %v94 = vld [vmem:[%s1 + $0x68] sm:$0xff]
    %v95 = vld [vmem:[%s1 + $0x70] sm:$0xff]
    %v96 = vld [vmem:[%s1 + $0x78] sm:$0xff]
    %v97 = vld [vmem:[%s1 + $0x80] sm:$0xff]
    %v98 = vld [vmem:[%s1 + $0x88] sm:$0xff]
    %v99 = vld [vmem:[%s1 + $0x90] sm:$0xff]
    %v100 = vld [vmem:[%s1 + $0x98] sm:$0xff]
    %v101 = vld [vmem:[%s1 + $0xa0] sm:$0xff]
    %v102 = vld [vmem:[%s1 + $0xa8] sm:$0xff]
    %v103 = vld [vmem:[%s1 + $0xb0] sm:$0xff]
    %v104 = vld [vmem:[%s1 + $0xb8] sm:$0xff]
    %v105 = vld [vmem:[%s1 + $0xc0] sm:$0xff]
    %v106 = vld [vmem:[%s1 + $0xc8] sm:$0xff]
    %v107 = vld [vmem:[%s1 + $0xd0] sm:$0xff]
    %v108 = vld [vmem:[%s1 + $0xd8] sm:$0xff]
    %v109 = vld [vmem:[%s1 + $0xe0] sm:$0xff]
    %v110 = vld [vmem:[%s1 + $0xe8] sm:$0xff]
    %v111 = vld [vmem:[%s1 + $0xf0] sm:$0xff]
    %v112 = vld [vmem:[%s1 + $0xf8] sm:$0xff]
    %v113 = vld [vmem:[%s0] sm:$0xf]
    %v114 = vld [vmem:[%s0 + $0x4] sm:$0xf]
    %v115 = vld [vmem:[%s0 + $0x8] sm:$0xf]
    %v116 = vld [vmem:[%s0 + $0xc] sm:$0xf]
    %v117 = vld [vmem:[%s0 + $0x10] sm:$0xf]
    %v118 = vld [vmem:[%s0 + $0x14] sm:$0xf]
    %v119 = vld [vmem:[%s0 + $0x18] sm:$0xf]
    %v120 = vld [vmem:[%s0 + $0x1c] sm:$0xf]
    %v121 = vld [vmem:[%s0 + $0x20] sm:$0xf]
    %v122 = vld [vmem:[%s0 + $0x24] sm:$0xf]
    %v123 = vld [vmem:[%s0 + $0x28] sm:$0xf]
    %v124 = vld [vmem:[%s0 + $0x2c] sm:$0xf]
    %v125 = vld [vmem:[%s0 + $0x30] sm:$0xf]
    %v126 = vld [vmem:[%s0 + $0x34] sm:$0xf]
    %v127 = vld [vmem:[%s0 + $0x38] sm:$0xf]
    %v128 = vld [vmem:[%s0 + $0x3c] sm:$0xf]
    %v129 = vld [vmem:[%s0 + $0x40] sm:$0xf]
    %v130 = vld [vmem:[%s0 + $0x44] sm:$0xf]
    %v131 = vld [vmem:[%s0 + $0x48] sm:$0xf]
    %v132 = vld [vmem:[%s0 + $0x4c] sm:$0xf]
    %v133 = vld [vmem:[%s0 + $0x50] sm:$0xf]
    %v134 = vld [vmem:[%s0 + $0x54] sm:$0xf]
    %v135 = vld [vmem:[%s0 + $0x58] sm:$0xf]
    %v136 = vld [vmem:[%s0 + $0x5c] sm:$0xf]
    %v137 = vld [vmem:[%s0 + $0x60] sm:$0xf]
    %v138 = vld [vmem:[%s0 + $0x64] sm:$0xf]
    %v139 = vld [vmem:[%s0 + $0x68] sm:$0xf]
    %v140 = vld [vmem:[%s0 + $0x6c] sm:$0xf]
    %v141 = vld [vmem:[%s0 + $0x70] sm:$0xf]
    %v142 = vld [vmem:[%s0 + $0x74] sm:$0xf]
    %v143 = vld [vmem:[%s0 + $0x78] sm:$0xf]
    %v144 = vld [vmem:[%s0 + $0x7c] sm:$0xf]
    %v177 = vunpack.c.l.b16 %v81
    %v178 = vunpack.c.h.b16 %v81
    %v179 = vunpack.c.l.b16 %v82
    %v180 = vunpack.c.h.b16 %v82
    %v181 = vunpack.c.l.b16 %v83
    %v182 = vunpack.c.h.b16 %v83
    %v183 = vunpack.c.l.b16 %v84
    %v184 = vunpack.c.h.b16 %v84
    %v185 = vunpack.c.l.b16 %v85
    %v186 = vunpack.c.h.b16 %v85
    %v187 = vunpack.c.l.b16 %v86
    %v188 = vunpack.c.h.b16 %v86
    %v189 = vunpack.c.l.b16 %v87
    %v190 = vunpack.c.h.b16 %v87
    %v191 = vunpack.c.l.b16 %v88
    %v192 = vunpack.c.h.b16 %v88
    %v193 = vunpack.c.l.b16 %v89
    %v194 = vunpack.c.h.b16 %v89
    %v195 = vunpack.c.l.b16 %v90
    %v196 = vunpack.c.h.b16 %v90
    %v197 = vunpack.c.l.b16 %v91
    %v198 = vunpack.c.h.b16 %v91
    %v199 = vunpack.c.l.b16 %v92
    %v200 = vunpack.c.h.b16 %v92
    %v201 = vunpack.c.l.b16 %v93
    %v202 = vunpack.c.h.b16 %v93
    %v203 = vunpack.c.l.b16 %v94
    %v204 = vunpack.c.h.b16 %v94
    %v205 = vunpack.c.l.b16 %v95
    %v206 = vunpack.c.h.b16 %v95
    %v207 = vunpack.c.l.b16 %v96
    %v208 = vunpack.c.h.b16 %v96
    %v209 = vunpack.c.l.b16 %v97
    %v210 = vunpack.c.h.b16 %v97
    %v211 = vunpack.c.l.b16 %v98
    %v212 = vunpack.c.h.b16 %v98
    %v213 = vunpack.c.l.b16 %v99
    %v214 = vunpack.c.h.b16 %v99
    %v215 = vunpack.c.l.b16 %v100
    %v216 = vunpack.c.h.b16 %v100
    %v217 = vunpack.c.l.b16 %v101
    %v218 = vunpack.c.h.b16 %v101
    %v219 = vunpack.c.l.b16 %v102
    %v220 = vunpack.c.h.b16 %v102
    %v221 = vunpack.c.l.b16 %v103
    %v222 = vunpack.c.h.b16 %v103
    %v223 = vunpack.c.l.b16 %v104
    %v224 = vunpack.c.h.b16 %v104
    %v225 = vunpack.c.l.b16 %v105
    %v226 = vunpack.c.h.b16 %v105
    %v227 = vunpack.c.l.b16 %v106
    %v228 = vunpack.c.h.b16 %v106
    %v229 = vunpack.c.l.b16 %v107
    %v230 = vunpack.c.h.b16 %v107
    %v231 = vunpack.c.l.b16 %v108
    %v232 = vunpack.c.h.b16 %v108
    %v233 = vunpack.c.l.b16 %v109
    %v234 = vunpack.c.h.b16 %v109
    %v235 = vunpack.c.l.b16 %v110
    %v236 = vunpack.c.h.b16 %v110
    %v237 = vunpack.c.l.b16 %v111
    %v238 = vunpack.c.h.b16 %v111
    %v239 = vunpack.c.l.b16 %v112
    %v240 = vunpack.c.h.b16 %v112
    %v241 = vpack.c.b16 %v179, %v177
    %v242 = vpack.c.b16 %v180, %v178
    %v243 = vpack.c.b16 %v183, %v181
    %v244 = vpack.c.b16 %v184, %v182
    %v245 = vpack.c.b16 %v187, %v185
    %v246 = vpack.c.b16 %v188, %v186
    %v247 = vpack.c.b16 %v191, %v189
    %v248 = vpack.c.b16 %v192, %v190
    %v249 = vpack.c.b16 %v195, %v193
    %v250 = vpack.c.b16 %v196, %v194
    %v251 = vpack.c.b16 %v199, %v197
    %v252 = vpack.c.b16 %v200, %v198
    %v253 = vpack.c.b16 %v203, %v201
    %v254 = vpack.c.b16 %v204, %v202
    %v255 = vpack.c.b16 %v207, %v205
    %v256 = vpack.c.b16 %v208, %v206
    %v257 = vpack.c.b16 %v211, %v209
    %v258 = vpack.c.b16 %v212, %v210
    %v259 = vpack.c.b16 %v215, %v213
    %v260 = vpack.c.b16 %v216, %v214
    %v261 = vpack.c.b16 %v219, %v217
    %v262 = vpack.c.b16 %v220, %v218
    %v263 = vpack.c.b16 %v223, %v221
    %v264 = vpack.c.b16 %v224, %v222
    %v265 = vpack.c.b16 %v227, %v225
    %v266 = vpack.c.b16 %v228, %v226
    %v267 = vpack.c.b16 %v231, %v229
    %v268 = vpack.c.b16 %v232, %v230
    %v269 = vpack.c.b16 %v235, %v233
    %v270 = vpack.c.b16 %v236, %v234
    %v271 = vpack.c.b16 %v239, %v237
    %v272 = vpack.c.b16 %v240, %v238
    %v337 = vunpack.c.l.b16 %v113
    %v338 = vunpack.c.l.b16 %v114
    %v339 = vunpack.c.l.b16 %v115
    %v340 = vunpack.c.l.b16 %v116
    %v341 = vunpack.c.l.b16 %v117
    %v342 = vunpack.c.l.b16 %v118
    %v343 = vunpack.c.l.b16 %v119
    %v344 = vunpack.c.l.b16 %v120
    %v345 = vunpack.c.l.b16 %v121
    %v346 = vunpack.c.l.b16 %v122
    %v347 = vunpack.c.l.b16 %v123
    %v348 = vunpack.c.l.b16 %v124
    %v349 = vunpack.c.l.b16 %v125
    %v350 = vunpack.c.l.b16 %v126
    %v351 = vunpack.c.l.b16 %v127
    %v352 = vunpack.c.l.b16 %v128
    %v353 = vunpack.c.l.b16 %v129
    %v354 = vunpack.c.l.b16 %v130
    %v355 = vunpack.c.l.b16 %v131
    %v356 = vunpack.c.l.b16 %v132
    %v357 = vunpack.c.l.b16 %v133
    %v358 = vunpack.c.l.b16 %v134
    %v359 = vunpack.c.l.b16 %v135
    %v360 = vunpack.c.l.b16 %v136
    %v361 = vunpack.c.l.b16 %v137
    %v362 = vunpack.c.l.b16 %v138
    %v363 = vunpack.c.l.b16 %v139
    %v364 = vunpack.c.l.b16 %v140
    %v365 = vunpack.c.l.b16 %v141
    %v366 = vunpack.c.l.b16 %v142
    %v367 = vunpack.c.l.b16 %v143
    %v368 = vunpack.c.l.b16 %v144
    %v369 = vpack.c.b16 %v338, %v337
    %v370 = vpack.c.b16 %v340, %v339
    %v371 = vpack.c.b16 %v342, %v341
    %v372 = vpack.c.b16 %v344, %v343
    %v373 = vpack.c.b16 %v346, %v345
    %v374 = vpack.c.b16 %v348, %v347
    %v375 = vpack.c.b16 %v350, %v349
    %v376 = vpack.c.b16 %v352, %v351
    %v377 = vpack.c.b16 %v354, %v353
    %v378 = vpack.c.b16 %v356, %v355
    %v379 = vpack.c.b16 %v358, %v357
    %v380 = vpack.c.b16 %v360, %v359
    %v381 = vpack.c.b16 %v362, %v361
    %v382 = vpack.c.b16 %v364, %v363
    %v383 = vpack.c.b16 %v366, %v365
    %v384 = vpack.c.b16 %v368, %v367
    %401 = vmatprep.subr.bf16.mxu0 0
    %402 = vmatpush1.bf16.msra.mxu0 %v369
    %403 = vmatprep.subr.bf16.mxu0 0
    %404 = vmatpush1.bf16.msra.mxu0 %v370
    %405 = vmatprep.subr.bf16.mxu0 0
    %406 = vmatpush1.bf16.msra.mxu0 %v371
    %407 = vmatprep.subr.bf16.mxu0 0
    %408 = vmatpush1.bf16.msra.mxu0 %v372
    %409 = vmatprep.subr.bf16.mxu0 0
    %410 = vmatpush1.bf16.msra.mxu0 %v373
    %411 = vmatprep.subr.bf16.mxu0 0
    %412 = vmatpush1.bf16.msra.mxu0 %v374
    %413 = vmatprep.subr.bf16.mxu0 0
    %414 = vmatpush1.bf16.msra.mxu0 %v375
    %415 = vmatprep.subr.bf16.mxu0 0
    %416 = vmatpush1.bf16.msra.mxu0 %v376
    %417 = vmatprep.subr.bf16.mxu0 0
    %418 = vmatpush1.bf16.msra.mxu0 %v377
    %419 = vmatprep.subr.bf16.mxu0 0
    %420 = vmatpush1.bf16.msra.mxu0 %v378
    %421 = vmatprep.subr.bf16.mxu0 0
    %422 = vmatpush1.bf16.msra.mxu0 %v379
    %423 = vmatprep.subr.bf16.mxu0 0
    %424 = vmatpush1.bf16.msra.mxu0 %v380
    %425 = vmatprep.subr.bf16.mxu0 0
    %426 = vmatpush1.bf16.msra.mxu0 %v381
    %427 = vmatprep.subr.bf16.mxu0 0
    %428 = vmatpush1.bf16.msra.mxu0 %v382
    %429 = vmatprep.subr.bf16.mxu0 0
    %430 = vmatpush1.bf16.msra.mxu0 %v383
    %431 = vmatprep.subr.bf16.mxu0 0
    %432 = vmatpush1.bf16.msra.mxu0 %v384
    %433 = vmatprep.mubr.bf16.mxu0 %v242
    %434 = vmatmul.mubr.bf16.gmra.mrb[0].mxu0 %v241
    %v435 = vpop.f32.mrb[0].mxu0
    %v436 = vadd.f32 0.0, %v435
    %v437 = vpop.f32.mrb[0].mxu0
    %v438 = vpop.f32.mrb[0].mxu0
    %v439 = vadd.f32 0.0, %v438
    %v440 = vpop.f32.mrb[0].mxu0
    %441 = vmatprep.mubr.bf16.mxu0 %v244
    %442 = vmatmul.mubr.bf16.gmra.mrb[0].mxu0 %v243
    %v443 = vpop.f32.mrb[0].mxu0
    %v444 = vadd.f32 0.0, %v443
    %v445 = vpop.f32.mrb[0].mxu0
    %v446 = vpop.f32.mrb[0].mxu0
    %v447 = vadd.f32 0.0, %v446
    %v448 = vpop.f32.mrb[0].mxu0
    %449 = vmatprep.mubr.bf16.mxu0 %v246
    %450 = vmatmul.mubr.bf16.gmra.mrb[0].mxu0 %v245
    %v451 = vpop.f32.mrb[0].mxu0
    %v452 = vadd.f32 0.0, %v451
    %v453 = vpop.f32.mrb[0].mxu0
    %v454 = vpop.f32.mrb[0].mxu0
    %v455 = vadd.f32 0.0, %v454
    %v456 = vpop.f32.mrb[0].mxu0
    %457 = vmatprep.mubr.bf16.mxu0 %v248
    %458 = vmatmul.mubr.bf16.gmra.mrb[0].mxu0 %v247
    %v459 = vpop.f32.mrb[0].mxu0
    %v460 = vadd.f32 0.0, %v459
    %v461 = vpop.f32.mrb[0].mxu0
    %v462 = vpop.f32.mrb[0].mxu0
    %v463 = vadd.f32 0.0, %v462
    %v464 = vpop.f32.mrb[0].mxu0
    %465 = vmatprep.mubr.bf16.mxu0 %v250
    %466 = vmatmul.mubr.bf16.gmra.mrb[0].mxu0 %v249
    %v467 = vpop.f32.mrb[0].mxu0
    %v468 = vadd.f32 0.0, %v467
    %v469 = vpop.f32.mrb[0].mxu0
    %v470 = vpop.f32.mrb[0].mxu0
    %v471 = vadd.f32 0.0, %v470
    %v472 = vpop.f32.mrb[0].mxu0
    %473 = vmatprep.mubr.bf16.mxu0 %v252
    %474 = vmatmul.mubr.bf16.gmra.mrb[0].mxu0 %v251
    %v475 = vpop.f32.mrb[0].mxu0
    %v476 = vadd.f32 0.0, %v475
    %v477 = vpop.f32.mrb[0].mxu0
    %v478 = vpop.f32.mrb[0].mxu0
    %v479 = vadd.f32 0.0, %v478
    %v480 = vpop.f32.mrb[0].mxu0
    %481 = vmatprep.mubr.bf16.mxu0 %v254
    %482 = vmatmul.mubr.bf16.gmra.mrb[0].mxu0 %v253
    %v483 = vpop.f32.mrb[0].mxu0
    %v484 = vadd.f32 0.0, %v483
    %v485 = vpop.f32.mrb[0].mxu0
    %v486 = vpop.f32.mrb[0].mxu0
    %v487 = vadd.f32 0.0, %v486
    %v488 = vpop.f32.mrb[0].mxu0
    %489 = vmatprep.mubr.bf16.mxu0 %v256
    %490 = vmatmul.mubr.bf16.gmra.mrb[0].mxu0 %v255
    %v491 = vpop.f32.mrb[0].mxu0
    %v492 = vadd.f32 0.0, %v491
    %v493 = vpop.f32.mrb[0].mxu0
    %v494 = vpop.f32.mrb[0].mxu0
    %v495 = vadd.f32 0.0, %v494
    %v496 = vpop.f32.mrb[0].mxu0
    %497 = vmatprep.mubr.bf16.mxu0 %v258
    %498 = vmatmul.mubr.bf16.gmra.mrb[0].mxu0 %v257
    %v499 = vpop.f32.mrb[0].mxu0
    %v500 = vadd.f32 0.0, %v499
    %v501 = vpop.f32.mrb[0].mxu0
    %v502 = vpop.f32.mrb[0].mxu0
    %v503 = vadd.f32 0.0, %v502
    %v504 = vpop.f32.mrb[0].mxu0
    %505 = vmatprep.mubr.bf16.mxu0 %v260
    %506 = vmatmul.mubr.bf16.gmra.mrb[0].mxu0 %v259
    %v507 = vpop.f32.mrb[0].mxu0
    %v508 = vadd.f32 0.0, %v507
    %v509 = vpop.f32.mrb[0].mxu0
    %v510 = vpop.f32.mrb[0].mxu0
    %v511 = vadd.f32 0.0, %v510
    %v512 = vpop.f32.mrb[0].mxu0
    %513 = vmatprep.mubr.bf16.mxu0 %v262
    %514 = vmatmul.mubr.bf16.gmra.mrb[0].mxu0 %v261
    %v515 = vpop.f32.mrb[0].mxu0
    %v516 = vadd.f32 0.0, %v515
    %v517 = vpop.f32.mrb[0].mxu0
    %v518 = vpop.f32.mrb[0].mxu0
    %v519 = vadd.f32 0.0, %v518
    %v520 = vpop.f32.mrb[0].mxu0
    %521 = vmatprep.mubr.bf16.mxu0 %v264
    %522 = vmatmul.mubr.bf16.gmra.mrb[0].mxu0 %v263
    %v523 = vpop.f32.mrb[0].mxu0
    %v524 = vadd.f32 0.0, %v523
    %v525 = vpop.f32.mrb[0].mxu0
    %v526 = vpop.f32.mrb[0].mxu0
    %v527 = vadd.f32 0.0, %v526
    %v528 = vpop.f32.mrb[0].mxu0
    %529 = vmatprep.mubr.bf16.mxu0 %v266
    %530 = vmatmul.mubr.bf16.gmra.mrb[0].mxu0 %v265
    %v531 = vpop.f32.mrb[0].mxu0
    %v532 = vadd.f32 0.0, %v531
    %v533 = vpop.f32.mrb[0].mxu0
    %v534 = vpop.f32.mrb[0].mxu0
    %v535 = vadd.f32 0.0, %v534
    %v536 = vpop.f32.mrb[0].mxu0
    %537 = vmatprep.mubr.bf16.mxu0 %v268
    %538 = vmatmul.mubr.bf16.gmra.mrb[0].mxu0 %v267
    %v539 = vpop.f32.mrb[0].mxu0
    %v540 = vadd.f32 0.0, %v539
    %v541 = vpop.f32.mrb[0].mxu0
    %v542 = vpop.f32.mrb[0].mxu0
    %v543 = vadd.f32 0.0, %v542
    %v544 = vpop.f32.mrb[0].mxu0
    %545 = vmatprep.mubr.bf16.mxu0 %v270
    %546 = vmatmul.mubr.bf16.gmra.mrb[0].mxu0 %v269
    %v547 = vpop.f32.mrb[0].mxu0
    %v548 = vadd.f32 0.0, %v547
    %v549 = vpop.f32.mrb[0].mxu0
    %v550 = vpop.f32.mrb[0].mxu0
    %v551 = vadd.f32 0.0, %v550
    %v552 = vpop.f32.mrb[0].mxu0
    %553 = vmatprep.mubr.bf16.mxu0 %v272
    %554 = vmatmul.mubr.bf16.gmra.mrb[0].mxu0 %v271
    %v555 = vpop.f32.mrb[0].mxu0
    %v556 = vadd.f32 0.0, %v555
    %v557 = vpop.f32.mrb[0].mxu0
    %v558 = vpop.f32.mrb[0].mxu0
    %v559 = vadd.f32 0.0, %v558
    %v560 = vpop.f32.mrb[0].mxu0
    %561 = vdwg.mxu0
    %v562 = vadd.f32 %v49, %v436
    %v563 = vadd.f32 %v50, %v439
    %v564 = vadd.f32 %v51, %v444
    %v565 = vadd.f32 %v52, %v447
    %v566 = vadd.f32 %v53, %v452
    %v567 = vadd.f32 %v54, %v455
    %v568 = vadd.f32 %v55, %v460
    %v569 = vadd.f32 %v56, %v463
    %v570 = vadd.f32 %v57, %v468
    %v571 = vadd.f32 %v58, %v471
    %v572 = vadd.f32 %v59, %v476
    %v573 = vadd.f32 %v60, %v479
    %v574 = vadd.f32 %v61, %v484
    %v575 = vadd.f32 %v62, %v487
    %v576 = vadd.f32 %v63, %v492
    %v577 = vadd.f32 %v64, %v495
    %v578 = vadd.f32 %v65, %v500
    %v579 = vadd.f32 %v66, %v503
    %v580 = vadd.f32 %v67, %v508
    %v581 = vadd.f32 %v68, %v511
    %v582 = vadd.f32 %v69, %v516
    %v583 = vadd.f32 %v70, %v519
    %v584 = vadd.f32 %v71, %v524
    %v585 = vadd.f32 %v72, %v527
    %v586 = vadd.f32 %v73, %v532
    %v587 = vadd.f32 %v74, %v535
    %v588 = vadd.f32 %v75, %v540
    %v589 = vadd.f32 %v76, %v543
    %v590 = vadd.f32 %v77, %v548
    %v591 = vadd.f32 %v78, %v551
    %v592 = vadd.f32 %v79, %v556
    %v593 = vadd.f32 %v80, %v559
    %594 = vst [vmem:[#allocation2] sm:$0xff] %v562
    %595 = vst [vmem:[#allocation2 + $0x8] sm:$0xff] %v563
    %596 = vst [vmem:[#allocation2 + $0x10] sm:$0xff] %v564
    %597 = vst [vmem:[#allocation2 + $0x18] sm:$0xff] %v565
    %598 = vst [vmem:[#allocation2 + $0x20] sm:$0xff] %v566
    %599 = vst [vmem:[#allocation2 + $0x28] sm:$0xff] %v567
    %600 = vst [vmem:[#allocation2 + $0x30] sm:$0xff] %v568
    %601 = vst [vmem:[#allocation2 + $0x38] sm:$0xff] %v569
    %602 = vst [vmem:[#allocation2 + $0x40] sm:$0xff] %v570
    %603 = vst [vmem:[#allocation2 + $0x48] sm:$0xff] %v571
    %604 = vst [vmem:[#allocation2 + $0x50] sm:$0xff] %v572
    %605 = vst [vmem:[#allocation2 + $0x58] sm:$0xff] %v573
    %606 = vst [vmem:[#allocation2 + $0x60] sm:$0xff] %v574
    %607 = vst [vmem:[#allocation2 + $0x68] sm:$0xff] %v575
    %608 = vst [vmem:[#allocation2 + $0x70] sm:$0xff] %v576
    %609 = vst [vmem:[#allocation2 + $0x78] sm:$0xff] %v577
    %610 = vst [vmem:[#allocation2 + $0x80] sm:$0xff] %v578
    %611 = vst [vmem:[#allocation2 + $0x88] sm:$0xff] %v579
    %612 = vst [vmem:[#allocation2 + $0x90] sm:$0xff] %v580
    %613 = vst [vmem:[#allocation2 + $0x98] sm:$0xff] %v581
    %614 = vst [vmem:[#allocation2 + $0xa0] sm:$0xff] %v582
    %615 = vst [vmem:[#allocation2 + $0xa8] sm:$0xff] %v583
    %616 = vst [vmem:[#allocation2 + $0xb0] sm:$0xff] %v584
    %617 = vst [vmem:[#allocation2 + $0xb8] sm:$0xff] %v585
    %618 = vst [vmem:[#allocation2 + $0xc0] sm:$0xff] %v586
    %619 = vst [vmem:[#allocation2 + $0xc8] sm:$0xff] %v587
    %620 = vst [vmem:[#allocation2 + $0xd0] sm:$0xff] %v588
    %621 = vst [vmem:[#allocation2 + $0xd8] sm:$0xff] %v589
    %622 = vst [vmem:[#allocation2 + $0xe0] sm:$0xff] %v590
    %623 = vst [vmem:[#allocation2 + $0xe8] sm:$0xff] %v591
    %624 = vst [vmem:[#allocation2 + $0xf0] sm:$0xff] %v592
    %625 = vst [vmem:[#allocation2 + $0xf8] sm:$0xff] %v593
    %p626 = scmp.eq.s32.totalorder 0, 0
    // Predicated region
    $region14: #{hgnn_embedding_forward.1} parent=1 // pred_check
      %p627 = pneg %p626
    $region15: #{hgnn_embedding_forward.1} parent=1 // pred_check_branch
      %629 = sbr.rel (%p627) target = $region17
    $region16: #{hgnn_embedding_forward.1} parent=1 // pred_region
      %v630 = vld [vmem:[#allocation2] sm:$0xff]
      %v631 = vld [vmem:[#allocation2 + $0x8] sm:$0xff]
      %v632 = vld [vmem:[#allocation2 + $0x10] sm:$0xff]
      %v633 = vld [vmem:[#allocation2 + $0x18] sm:$0xff]
      %v634 = vld [vmem:[#allocation2 + $0x20] sm:$0xff]
      %v635 = vld [vmem:[#allocation2 + $0x28] sm:$0xff]
      %v636 = vld [vmem:[#allocation2 + $0x30] sm:$0xff]
      %v637 = vld [vmem:[#allocation2 + $0x38] sm:$0xff]
      %v638 = vld [vmem:[#allocation2 + $0x40] sm:$0xff]
      %v639 = vld [vmem:[#allocation2 + $0x48] sm:$0xff]
      %v640 = vld [vmem:[#allocation2 + $0x50] sm:$0xff]
      %v641 = vld [vmem:[#allocation2 + $0x58] sm:$0xff]
      %v642 = vld [vmem:[#allocation2 + $0x60] sm:$0xff]
      %v643 = vld [vmem:[#allocation2 + $0x68] sm:$0xff]
      %v644 = vld [vmem:[#allocation2 + $0x70] sm:$0xff]
      %v645 = vld [vmem:[#allocation2 + $0x78] sm:$0xff]
      %v646 = vld [vmem:[#allocation2 + $0x80] sm:$0xff]
      %v647 = vld [vmem:[#allocation2 + $0x88] sm:$0xff]
      %v648 = vld [vmem:[#allocation2 + $0x90] sm:$0xff]
      %v649 = vld [vmem:[#allocation2 + $0x98] sm:$0xff]
      %v650 = vld [vmem:[#allocation2 + $0xa0] sm:$0xff]
      %v651 = vld [vmem:[#allocation2 + $0xa8] sm:$0xff]
      %v652 = vld [vmem:[#allocation2 + $0xb0] sm:$0xff]
      %v653 = vld [vmem:[#allocation2 + $0xb8] sm:$0xff]
      %v654 = vld [vmem:[#allocation2 + $0xc0] sm:$0xff]
      %v655 = vld [vmem:[#allocation2 + $0xc8] sm:$0xff]
      %v656 = vld [vmem:[#allocation2 + $0xd0] sm:$0xff]
      %v657 = vld [vmem:[#allocation2 + $0xd8] sm:$0xff]
      %v658 = vld [vmem:[#allocation2 + $0xe0] sm:$0xff]
      %v659 = vld [vmem:[#allocation2 + $0xe8] sm:$0xff]
      %v660 = vld [vmem:[#allocation2 + $0xf0] sm:$0xff]
      %v661 = vld [vmem:[#allocation2 + $0xf8] sm:$0xff]
      %v662 = vld [vmem:[%s0] sm:$0xf]
      %v663 = vld [vmem:[%s0 + $0x4] sm:$0xf]
      %v664 = vld [vmem:[%s0 + $0x8] sm:$0xf]
      %v665 = vld [vmem:[%s0 + $0xc] sm:$0xf]
      %v666 = vld [vmem:[%s0 + $0x10] sm:$0xf]
      %v667 = vld [vmem:[%s0 + $0x14] sm:$0xf]
      %v668 = vld [vmem:[%s0 + $0x18] sm:$0xf]
      %v669 = vld [vmem:[%s0 + $0x1c] sm:$0xf]
      %v670 = vld [vmem:[%s0 + $0x20] sm:$0xf]
      %v671 = vld [vmem:[%s0 + $0x24] sm:$0xf]
      %v672 = vld [vmem:[%s0 + $0x28] sm:$0xf]
      %v673 = vld [vmem:[%s0 + $0x2c] sm:$0xf]
      %v674 = vld [vmem:[%s0 + $0x30] sm:$0xf]
      %v675 = vld [vmem:[%s0 + $0x34] sm:$0xf]
      %v676 = vld [vmem:[%s0 + $0x38] sm:$0xf]
      %v677 = vld [vmem:[%s0 + $0x3c] sm:$0xf]
      %v678 = vld [vmem:[%s0 + $0x40] sm:$0xf]
      %v679 = vld [vmem:[%s0 + $0x44] sm:$0xf]
      %v680 = vld [vmem:[%s0 + $0x48] sm:$0xf]
      %v681 = vld [vmem:[%s0 + $0x4c] sm:$0xf]
      %v682 = vld [vmem:[%s0 + $0x50] sm:$0xf]
      %v683 = vld [vmem:[%s0 + $0x54] sm:$0xf]
      %v684 = vld [vmem:[%s0 + $0x58] sm:$0xf]
      %v685 = vld [vmem:[%s0 + $0x5c] sm:$0xf]
      %v686 = vld [vmem:[%s0 + $0x60] sm:$0xf]
      %v687 = vld [vmem:[%s0 + $0x64] sm:$0xf]
      %v688 = vld [vmem:[%s0 + $0x68] sm:$0xf]
      %v689 = vld [vmem:[%s0 + $0x6c] sm:$0xf]
      %v690 = vld [vmem:[%s0 + $0x70] sm:$0xf]
      %v691 = vld [vmem:[%s0 + $0x74] sm:$0xf]
      %v692 = vld [vmem:[%s0 + $0x78] sm:$0xf]
      %v693 = vld [vmem:[%s0 + $0x7c] sm:$0xf]
      %v694 = vunpack.c.l.bf16 %v662
      %v695 = vunpack.c.l.bf16 %v663
      %v696 = vunpack.c.l.bf16 %v664
      %v697 = vunpack.c.l.bf16 %v665
      %v698 = vunpack.c.l.bf16 %v666
      %v699 = vunpack.c.l.bf16 %v667
      %v700 = vunpack.c.l.bf16 %v668
      %v701 = vunpack.c.l.bf16 %v669
      %v702 = vunpack.c.l.bf16 %v670
      %v703 = vunpack.c.l.bf16 %v671
      %v704 = vunpack.c.l.bf16 %v672
      %v705 = vunpack.c.l.bf16 %v673
      %v706 = vunpack.c.l.bf16 %v674
      %v707 = vunpack.c.l.bf16 %v675
      %v708 = vunpack.c.l.bf16 %v676
      %v709 = vunpack.c.l.bf16 %v677
      %v710 = vunpack.c.l.bf16 %v678
      %v711 = vunpack.c.l.bf16 %v679
      %v712 = vunpack.c.l.bf16 %v680
      %v713 = vunpack.c.l.bf16 %v681
      %v714 = vunpack.c.l.bf16 %v682
      %v715 = vunpack.c.l.bf16 %v683
      %v716 = vunpack.c.l.bf16 %v684
      %v717 = vunpack.c.l.bf16 %v685
      %v718 = vunpack.c.l.bf16 %v686
      %v719 = vunpack.c.l.bf16 %v687
      %v720 = vunpack.c.l.bf16 %v688
      %v721 = vunpack.c.l.bf16 %v689
      %v722 = vunpack.c.l.bf16 %v690
      %v723 = vunpack.c.l.bf16 %v691
      %v724 = vunpack.c.l.bf16 %v692
      %v725 = vunpack.c.l.bf16 %v693
      %v726 = vadd.f32 %v630, %v694
      %v727 = vadd.f32 %v631, %v695
      %v728 = vadd.f32 %v632, %v696
      %v729 = vadd.f32 %v633, %v697
      %v730 = vadd.f32 %v634, %v698
      %v731 = vadd.f32 %v635, %v699
      %v732 = vadd.f32 %v636, %v700
      %v733 = vadd.f32 %v637, %v701
      %v734 = vadd.f32 %v638, %v702
      %v735 = vadd.f32 %v639, %v703
      %v736 = vadd.f32 %v640, %v704
      %v737 = vadd.f32 %v641, %v705
      %v738 = vadd.f32 %v642, %v706
      %v739 = vadd.f32 %v643, %v707
      %v740 = vadd.f32 %v644, %v708
      %v741 = vadd.f32 %v645, %v709
      %v742 = vadd.f32 %v646, %v710
      %v743 = vadd.f32 %v647, %v711
      %v744 = vadd.f32 %v648, %v712
      %v745 = vadd.f32 %v649, %v713
      %v746 = vadd.f32 %v650, %v714
      %v747 = vadd.f32 %v651, %v715
      %v748 = vadd.f32 %v652, %v716
      %v749 = vadd.f32 %v653, %v717
      %v750 = vadd.f32 %v654, %v718
      %v751 = vadd.f32 %v655, %v719
      %v752 = vadd.f32 %v656, %v720
      %v753 = vadd.f32 %v657, %v721
      %v754 = vadd.f32 %v658, %v722
      %v755 = vadd.f32 %v659, %v723
      %v756 = vadd.f32 %v660, %v724
      %v757 = vadd.f32 %v661, %v725
      %758 = vst [vmem:[#allocation2] sm:$0xff] %v726
      %759 = vst [vmem:[#allocation2 + $0x8] sm:$0xff] %v727
      %760 = vst [vmem:[#allocation2 + $0x10] sm:$0xff] %v728
      %761 = vst [vmem:[#allocation2 + $0x18] sm:$0xff] %v729
      %762 = vst [vmem:[#allocation2 + $0x20] sm:$0xff] %v730
      %763 = vst [vmem:[#allocation2 + $0x28] sm:$0xff] %v731
      %764 = vst [vmem:[#allocation2 + $0x30] sm:$0xff] %v732
      %765 = vst [vmem:[#allocation2 + $0x38] sm:$0xff] %v733
      %766 = vst [vmem:[#allocation2 + $0x40] sm:$0xff] %v734
      %767 = vst [vmem:[#allocation2 + $0x48] sm:$0xff] %v735
      %768 = vst [vmem:[#allocation2 + $0x50] sm:$0xff] %v736
      %769 = vst [vmem:[#allocation2 + $0x58] sm:$0xff] %v737
      %770 = vst [vmem:[#allocation2 + $0x60] sm:$0xff] %v738
      %771 = vst [vmem:[#allocation2 + $0x68] sm:$0xff] %v739
      %772 = vst [vmem:[#allocation2 + $0x70] sm:$0xff] %v740
      %773 = vst [vmem:[#allocation2 + $0x78] sm:$0xff] %v741
      %774 = vst [vmem:[#allocation2 + $0x80] sm:$0xff] %v742
      %775 = vst [vmem:[#allocation2 + $0x88] sm:$0xff] %v743
      %776 = vst [vmem:[#allocation2 + $0x90] sm:$0xff] %v744
      %777 = vst [vmem:[#allocation2 + $0x98] sm:$0xff] %v745
      %778 = vst [vmem:[#allocation2 + $0xa0] sm:$0xff] %v746
      %779 = vst [vmem:[#allocation2 + $0xa8] sm:$0xff] %v747
      %780 = vst [vmem:[#allocation2 + $0xb0] sm:$0xff] %v748
      %781 = vst [vmem:[#allocation2 + $0xb8] sm:$0xff] %v749
      %782 = vst [vmem:[#allocation2 + $0xc0] sm:$0xff] %v750
      %783 = vst [vmem:[#allocation2 + $0xc8] sm:$0xff] %v751
      %784 = vst [vmem:[#allocation2 + $0xd0] sm:$0xff] %v752
      %785 = vst [vmem:[#allocation2 + $0xd8] sm:$0xff] %v753
      %786 = vst [vmem:[#allocation2 + $0xe0] sm:$0xff] %v754
      %787 = vst [vmem:[#allocation2 + $0xe8] sm:$0xff] %v755
      %788 = vst [vmem:[#allocation2 + $0xf0] sm:$0xff] %v756
      %789 = vst [vmem:[#allocation2 + $0xf8] sm:$0xff] %v757
    $region17: #{hgnn_embedding_forward.1} parent=1 // pred_fallthru
      _
    // Predicated region
    $region18: #{hgnn_embedding_forward.1} parent=1 // pred_check
      _
    $region19: #{hgnn_embedding_forward.1} parent=1 // pred_check_branch
      %791 = sbr.rel (0) target = $region21
    $region20: #{hgnn_embedding_forward.1} parent=1 // pred_region
      %s793 = ssub.s32 4096, 4096
      %794 = vsyncadd [#allocation3], %s793
      %s795 = sshll.u32 [#allocation2], 4
      %s796 = int_to_ptr.vmem [resolvable:$true] %s795
      %801 = dma.vmem_to_hbm [thread:$0]  %s796, 4096, %s2, [#allocation3], 128, 128, 8
    $region21: #{hgnn_embedding_forward.1} parent=1 // pred_fallthru
      _
    // Predicated region
    $region22: #{hgnn_embedding_forward.1} parent=1 // pred_check
      _
    $region23: #{hgnn_embedding_forward.1} parent=1 // pred_check_branch
      %803 = sbr.rel (0) target = $region25
    $region24: #{hgnn_embedding_forward.1} parent=1 // pred_region
      %804 = dma.done [#allocation3], 4096
    $region25: #{hgnn_embedding_forward.1} parent=1 // pred_fallthru
      _
    %805 = vsyncpa [#allocation3], 1

</llo_original>
